<compile_context>
chip_gen: v7x
topology: tpu7x:2x2x1
jax: 0.10.0
libtpu: 0.0.40
codegen_flags: <defaults>
</compile_context>

<pallas_src>
import functools

import jax
import jax.numpy as jnp
from jax import lax
from jax.experimental import pallas as pl
from jax.experimental.pallas import tpu as pltpu


def _mlp_kernel(x_ref, w_in_ref, b_in_ref, w_h_ref, b_h_ref, w_out_ref, o_ref):
    # Input layer: cast x to bf16 in-kernel (saves a separate wrapper-side XLA
    # cast pass over x in HBM); bf16 MXU matmul with f32 accumulation; bias add
    # and ReLU on the VPU in f32 (v5e VPU has no bf16).
    x = x_ref[...].astype(jnp.bfloat16)
    h = jnp.dot(x, w_in_ref[...], preferred_element_type=jnp.float32)
    h = jnp.maximum(h + b_in_ref[...], 0.0)

    depth = w_h_ref.shape[0]

    def hidden_layer(i, h):
        z = jnp.dot(h.astype(jnp.bfloat16), w_h_ref[i],
                    preferred_element_type=jnp.float32)
        return jnp.maximum(z + b_h_ref[i], 0.0)

    if depth <= 8:
        # Shallow stack: fully unroll. Static indices -> cheap aligned VMEM
        # loads, and the LLO scheduler sees the whole layer chain.
        for i in range(depth):
            h = hidden_layer(i, h)
    else:
        # Deep stack: bound vreg live ranges with a partially-unrolled loop.
        h = lax.fori_loop(0, depth, hidden_layer, h, unroll=2)

    # Output layer (out_features == 1, no bias), lane-dense:
    #   o[0, b] = sum_k w_out[0, k] * h[b, k]   ->  one (1, block_b) row.
    row = jnp.einsum("oh,bh->ob", w_out_ref[...], h,
                     preferred_element_type=jnp.float32)
    o_ref[...] = row[None]


def _round_up(x, m):
    return ((x + m - 1) // m) * m


def _tensorcores_per_chip():
    """2 for dual-TC / megacore parts (v7x, v4, v5p), else 1 (v5e, v6e, ...)."""
    try:
        kind = jax.devices()[0].device_kind.lower()
    except Exception:
        return 1
    if "lite" in kind or "v5e" in kind or "v6e" in kind:
        return 1
    if "v7" in kind or "7x" in kind or "v4" in kind or "v5p" in kind or kind.endswith("v5"):
        return 2
    return 1


@functools.partial(jax.jit, static_argnames=("block_b",))
def _deep_nn_forward(x, w_in, b_in, w_h, b_h, w_out, *, block_b):
    B, input_dim = x.shape
    hidden = w_in.shape[1]
    depth = w_h.shape[0]

    b_pad = _round_up(B, block_b)
    if b_pad != B:
        # Only taken when B is not a multiple of the tile; padded rows compute
        # relu(b_in) garbage and are sliced off below.
        x = jnp.pad(x, ((0, b_pad - B), (0, 0)))
    num_blocks = b_pad // block_b

    # Weights / biases never change across grid steps -> single-buffer them.
    resident = dict(pipeline_mode=pl.Buffered(1))

    out = pl.pallas_call(
        _mlp_kernel,
        out_shape=jax.ShapeDtypeStruct((num_blocks, 1, block_b), jnp.float32),
        grid_spec=pltpu.PrefetchScalarGridSpec(
            num_scalar_prefetch=0,
            grid=(num_blocks,),
            in_specs=[
                pl.BlockSpec((block_b, input_dim), lambda i: (i, 0)),  # x tiled over batch
                pl.BlockSpec((input_dim, hidden), lambda i: (0, 0), **resident),
                pl.BlockSpec((1, hidden), lambda i: (0, 0), **resident),
                pl.BlockSpec((depth, hidden, hidden), lambda i: (0, 0, 0), **resident),
                pl.BlockSpec((depth, 1, hidden), lambda i: (0, 0, 0), **resident),
                pl.BlockSpec((1, hidden), lambda i: (0, 0), **resident),
            ],
            # Lane-dense output: one (1, block_b) row per grid step.
            out_specs=pl.BlockSpec((1, 1, block_b), lambda i: (i, 0, 0)),
        ),
        compiler_params=pltpu.CompilerParams(
            dimension_semantics=("parallel",)),  # megacore-shardable batch axis
    )(x, w_in, b_in, w_h, b_h, w_out)

    out = out.reshape(b_pad, 1)
    return out[:B] if b_pad != B else out


def deep_nn_forward(x, w_in, b_in, w_h, b_h, w_out, block_b=None):
    """MLP forward.

    x     : (B, input_dim) f32
    w_in  : (input_dim, hidden) bf16     b_in : (1, hidden) f32
    w_h   : (depth, hidden, hidden) bf16 b_h  : (depth, 1, hidden) f32
    w_out : (1, hidden) f32  (PyTorch output_layer.weight layout, no bias)
    returns (B, 1) f32
    """
    B = x.shape[0]
    if block_b is None:
        n_tc = _tensorcores_per_chip()
        # One large tile per TensorCore: grid=1 on single-TC chips (v5e/v6e),
        # 2 even tiles on dual-TC chips (v7x / megacore). Multiple of 16 rows
        # (bf16 sublane packing), capped at 512 rows (vreg-pressure ceiling).
        target = pl.cdiv(_round_up(B, 16), n_tc)
        block_b = max(16, min(_round_up(target, 16), 512))
    return _deep_nn_forward(x, w_in, b_in, w_h, b_h, w_out, block_b=block_b)


def xavier_uniform(key, shape, fan_in, fan_out):
    bound = (6.0 / (fan_in + fan_out)) ** 0.5
    return jax.random.uniform(key, shape, jnp.float32, -bound, bound)


def init_params(key, input_dim, hidden, depth):
    ks = jax.random.split(key, 3)
    # Matmul weights stored in bf16 once at init (no per-call cast passes).
    w_in = xavier_uniform(ks[0], (input_dim, hidden), input_dim, hidden).astype(jnp.bfloat16)
    b_in = jnp.zeros((1, hidden), jnp.float32)
    w_h = xavier_uniform(ks[1], (depth, hidden, hidden), hidden, hidden).astype(jnp.bfloat16)
    b_h = jnp.zeros((depth, 1, hidden), jnp.float32)
    w_out = xavier_uniform(ks[2], (1, hidden), hidden, 1)  # PyTorch (out=1, in=hidden), f32
    return w_in, b_in, w_h, b_h, w_out


def reference_forward(x, w_in, b_in, w_h, b_h, w_out):
    h = jnp.maximum(x @ w_in.astype(jnp.float32) + b_in, 0.0)
    for i in range(w_h.shape[0]):
        h = jnp.maximum(h @ w_h[i].astype(jnp.float32) + b_h[i], 0.0)
    return h @ w_out.T


if __name__ == "__main__":
    # Small shapes consistent with the module; batch chosen so the tile picker
    # yields grid=1 on v5e/v6e and 2 even 128-row tiles on v7x.
    batch, input_dim, hidden, depth = 256, 16, 32, 3

    key = jax.random.PRNGKey(0)
    kx, kp = jax.random.split(key)
    x = jax.random.normal(kx, (batch, input_dim), jnp.float32)
    params = init_params(kp, input_dim, hidden, depth)

    out = deep_nn_forward(x, *params)
    out = jax.block_until_ready(out)

    ref = reference_forward(x, *params)
    assert out.shape == (batch, 1)
    # bf16 activations/weights feeding the MXU (f32 accumulation) -> loosened
    # tolerance vs. the f32-activation reference.
    err = float(jnp.max(jnp.abs(out - ref)))
    assert jnp.allclose(out, ref, atol=5e-2, rtol=5e-2), f"max abs err {err}"

    print("KERNEL_OK")
</pallas_src>

<mosaic_0001>
module attributes {stable_mosaic.version = 11 : i64} {
  func.func @_mlp_kernel(%arg0: i32, %arg1: memref<256x16xf32, #tpu.memory_space<vmem>>, %arg2: memref<16x32xbf16, #tpu.memory_space<vmem>>, %arg3: memref<1x32xf32, #tpu.memory_space<vmem>>, %arg4: memref<3x32x32xbf16, #tpu.memory_space<vmem>>, %arg5: memref<3x1x32xf32, #tpu.memory_space<vmem>>, %arg6: memref<1x32xf32, #tpu.memory_space<vmem>>, %arg7: memref<1x1x256xf32, #tpu.memory_space<vmem>>) attributes {dimension_semantics = [#tpu.dimension_semantics<parallel>], iteration_bounds = array<i64: 1>, scalar_prefetch = 0 : i64, scratch_operands = 0 : i64, tpu.core_type = #tpu.core_type<tc>, window_params = [{transform_indices = @transform_0, window_bounds = array<i64: 256, 16>}, {pipeline_mode = #tpu.pipeline_mode<synchronous>, transform_indices = @transform_1, window_bounds = array<i64: 16, 32>}, {pipeline_mode = #tpu.pipeline_mode<synchronous>, transform_indices = @transform_2, window_bounds = array<i64: 1, 32>}, {pipeline_mode = #tpu.pipeline_mode<synchronous>, transform_indices = @transform_3, window_bounds = array<i64: 3, 32, 32>}, {pipeline_mode = #tpu.pipeline_mode<synchronous>, transform_indices = @transform_4, window_bounds = array<i64: 3, 1, 32>}, {pipeline_mode = #tpu.pipeline_mode<synchronous>, transform_indices = @transform_5, window_bounds = array<i64: 1, 32>}, {transform_indices = @transform_6, window_bounds = array<i64: 1, 1, 256>}]} {
    %c0 = arith.constant 0 : index
    %c0_0 = arith.constant 0 : index
    %0 = vector.load %arg1[%c0, %c0_0] : memref<256x16xf32, #tpu.memory_space<vmem>>, vector<256x16xf32>
    %1 = arith.truncf %0 : vector<256x16xf32> to vector<256x16xbf16>
    %c0_1 = arith.constant 0 : index
    %c0_2 = arith.constant 0 : index
    %2 = vector.load %arg2[%c0_1, %c0_2] : memref<16x32xbf16, #tpu.memory_space<vmem>>, vector<16x32xbf16>
    %cst = arith.constant dense<0.000000e+00> : vector<256x32xf32>
    %3 = tpu.matmul %1, %2, %cst {dimension_numbers = #tpu.dot_dimension_numbers<[1], [0], [0], [1], [0, 0, 1, 1], [], []>} : vector<256x16xbf16>, vector<16x32xbf16>, vector<256x32xf32> -> vector<256x32xf32>
    %c0_3 = arith.constant 0 : index
    %c0_4 = arith.constant 0 : index
    %4 = vector.load %arg3[%c0_3, %c0_4] : memref<1x32xf32, #tpu.memory_space<vmem>>, vector<1x32xf32>
    %5 = vector.broadcast %4 : vector<1x32xf32> to vector<256x32xf32>
    %6 = arith.addf %3, %5 : vector<256x32xf32>
    %cst_5 = arith.constant 0.000000e+00 : f32
    %7 = vector.broadcast %cst_5 : f32 to vector<256x32xf32>
    %8 = arith.maximumf %6, %7 : vector<256x32xf32>
    %9 = arith.truncf %8 : vector<256x32xf32> to vector<256x32xbf16>
    %c0_6 = arith.constant 0 : index
    %c0_7 = arith.constant 0 : index
    %c0_8 = arith.constant 0 : index
    %10 = vector.load %arg4[%c0_6, %c0_7, %c0_8] : memref<3x32x32xbf16, #tpu.memory_space<vmem>>, vector<1x32x32xbf16>
    %11 = vector.shape_cast %10 : vector<1x32x32xbf16> to vector<32x32xbf16>
    %cst_9 = arith.constant dense<0.000000e+00> : vector<256x32xf32>
    %12 = tpu.matmul %9, %11, %cst_9 {dimension_numbers = #tpu.dot_dimension_numbers<[1], [0], [0], [1], [0, 0, 1, 1], [], []>} : vector<256x32xbf16>, vector<32x32xbf16>, vector<256x32xf32> -> vector<256x32xf32>
    %c0_10 = arith.constant 0 : index
    %c0_11 = arith.constant 0 : index
    %c0_12 = arith.constant 0 : index
    %13 = vector.load %arg5[%c0_10, %c0_11, %c0_12] : memref<3x1x32xf32, #tpu.memory_space<vmem>>, vector<1x1x32xf32>
    %14 = vector.shape_cast %13 : vector<1x1x32xf32> to vector<1x32xf32>
    %15 = vector.broadcast %14 : vector<1x32xf32> to vector<256x32xf32>
    %16 = arith.addf %12, %15 : vector<256x32xf32>
    %cst_13 = arith.constant 0.000000e+00 : f32
    %17 = vector.broadcast %cst_13 : f32 to vector<256x32xf32>
    %18 = arith.maximumf %16, %17 : vector<256x32xf32>
    %19 = arith.truncf %18 : vector<256x32xf32> to vector<256x32xbf16>
    %c1 = arith.constant 1 : index
    %c0_14 = arith.constant 0 : index
    %c0_15 = arith.constant 0 : index
    %20 = vector.load %arg4[%c1, %c0_14, %c0_15] : memref<3x32x32xbf16, #tpu.memory_space<vmem>>, vector<1x32x32xbf16>
    %21 = vector.shape_cast %20 : vector<1x32x32xbf16> to vector<32x32xbf16>
    %cst_16 = arith.constant dense<0.000000e+00> : vector<256x32xf32>
    %22 = tpu.matmul %19, %21, %cst_16 {dimension_numbers = #tpu.dot_dimension_numbers<[1], [0], [0], [1], [0, 0, 1, 1], [], []>} : vector<256x32xbf16>, vector<32x32xbf16>, vector<256x32xf32> -> vector<256x32xf32>
    %c1_17 = arith.constant 1 : index
    %c0_18 = arith.constant 0 : index
    %c0_19 = arith.constant 0 : index
    %23 = vector.load %arg5[%c1_17, %c0_18, %c0_19] : memref<3x1x32xf32, #tpu.memory_space<vmem>>, vector<1x1x32xf32>
    %24 = vector.shape_cast %23 : vector<1x1x32xf32> to vector<1x32xf32>
    %25 = vector.broadcast %24 : vector<1x32xf32> to vector<256x32xf32>
    %26 = arith.addf %22, %25 : vector<256x32xf32>
    %cst_20 = arith.constant 0.000000e+00 : f32
    %27 = vector.broadcast %cst_20 : f32 to vector<256x32xf32>
    %28 = arith.maximumf %26, %27 : vector<256x32xf32>
    %29 = arith.truncf %28 : vector<256x32xf32> to vector<256x32xbf16>
    %c2 = arith.constant 2 : index
    %c0_21 = arith.constant 0 : index
    %c0_22 = arith.constant 0 : index
    %30 = vector.load %arg4[%c2, %c0_21, %c0_22] : memref<3x32x32xbf16, #tpu.memory_space<vmem>>, vector<1x32x32xbf16>
    %31 = vector.shape_cast %30 : vector<1x32x32xbf16> to vector<32x32xbf16>
    %cst_23 = arith.constant dense<0.000000e+00> : vector<256x32xf32>
    %32 = tpu.matmul %29, %31, %cst_23 {dimension_numbers = #tpu.dot_dimension_numbers<[1], [0], [0], [1], [0, 0, 1, 1], [], []>} : vector<256x32xbf16>, vector<32x32xbf16>, vector<256x32xf32> -> vector<256x32xf32>
    %c2_24 = arith.constant 2 : index
    %c0_25 = arith.constant 0 : index
    %c0_26 = arith.constant 0 : index
    %33 = vector.load %arg5[%c2_24, %c0_25, %c0_26] : memref<3x1x32xf32, #tpu.memory_space<vmem>>, vector<1x1x32xf32>
    %34 = vector.shape_cast %33 : vector<1x1x32xf32> to vector<1x32xf32>
    %35 = vector.broadcast %34 : vector<1x32xf32> to vector<256x32xf32>
    %36 = arith.addf %32, %35 : vector<256x32xf32>
    %cst_27 = arith.constant 0.000000e+00 : f32
    %37 = vector.broadcast %cst_27 : f32 to vector<256x32xf32>
    %38 = arith.maximumf %36, %37 : vector<256x32xf32>
    %c0_28 = arith.constant 0 : index
    %c0_29 = arith.constant 0 : index
    %39 = vector.load %arg6[%c0_28, %c0_29] : memref<1x32xf32, #tpu.memory_space<vmem>>, vector<1x32xf32>
    "tpu.trace_start"() <{level = 10 : i32, message = "oh,bh->ob"}> : () -> ()
    %cst_30 = arith.constant dense<0.000000e+00> : vector<1x256xf32>
    %40 = tpu.matmul %39, %38, %cst_30 {dimension_numbers = #tpu.dot_dimension_numbers<[1], [1], [0], [0], [0, 0, 1, 0], [], []>} : vector<1x32xf32>, vector<256x32xf32>, vector<1x256xf32> -> vector<1x256xf32>
    "tpu.trace_stop"() : () -> ()
    %41 = vector.shape_cast %40 : vector<1x256xf32> to vector<1x1x256xf32>
    %c0_31 = arith.constant 0 : index
    %c0_32 = arith.constant 0 : index
    %c0_33 = arith.constant 0 : index
    %42 = vector.load %arg7[%c0_31, %c0_32, %c0_33] : memref<1x1x256xf32, #tpu.memory_space<vmem>>, vector<1x1x256xf32>
    tpu.vector_store %arg7[%c0_31, %c0_32, %c0_33], %41 {strides = array<i32>} : memref<1x1x256xf32, #tpu.memory_space<vmem>>, vector<1x1x256xf32>,
    return
  }
  func.func @transform_0(%arg0: i32) -> (i32, i32) {
    %c0_i32 = arith.constant 0 : i32
    %c0_i32_0 = arith.constant 0 : i32
    return %arg0, %c0_i32 : i32, i32
  }
  func.func @transform_1(%arg0: i32) -> (i32, i32) {
    %c0_i32 = arith.constant 0 : i32
    %c0_i32_0 = arith.constant 0 : i32
    %c0_i32_1 = arith.constant 0 : i32
    return %c0_i32, %c0_i32_0 : i32, i32
  }
  func.func @transform_2(%arg0: i32) -> (i32, i32) {
    %c0_i32 = arith.constant 0 : i32
    %c0_i32_0 = arith.constant 0 : i32
    %c0_i32_1 = arith.constant 0 : i32
    return %c0_i32, %c0_i32_0 : i32, i32
  }
  func.func @transform_3(%arg0: i32) -> (i32, i32, i32) {
    %c0_i32 = arith.constant 0 : i32
    %c0_i32_0 = arith.constant 0 : i32
    %c0_i32_1 = arith.constant 0 : i32
    %c0_i32_2 = arith.constant 0 : i32
    return %c0_i32, %c0_i32_0, %c0_i32_1 : i32, i32, i32
  }
  func.func @transform_4(%arg0: i32) -> (i32, i32, i32) {
    %c0_i32 = arith.constant 0 : i32
    %c0_i32_0 = arith.constant 0 : i32
    %c0_i32_1 = arith.constant 0 : i32
    %c0_i32_2 = arith.constant 0 : i32
    return %c0_i32, %c0_i32_0, %c0_i32_1 : i32, i32, i32
  }
  func.func @transform_5(%arg0: i32) -> (i32, i32) {
    %c0_i32 = arith.constant 0 : i32
    %c0_i32_0 = arith.constant 0 : i32
    %c0_i32_1 = arith.constant 0 : i32
    return %c0_i32, %c0_i32_0 : i32, i32
  }
  func.func @transform_6(%arg0: i32) -> (i32, i32, i32) {
    %c0_i32 = arith.constant 0 : i32
    %c0_i32_0 = arith.constant 0 : i32
    %c0_i32_1 = arith.constant 0 : i32
    return %arg0, %c0_i32, %c0_i32_0 : i32, i32, i32
  }
}

</mosaic_0001>

<llo_original>
// kernel: _deep_nn_forward.1
$region0: #{_deep_nn_forward.1}
  #allocation0 [shape = 'u32[]', space=smem, size = 0x4, offset = 0x4, fixed_abs, tag = 'smem constant byte address 0x4 - core index']
  #allocation1 [shape = 'u32[144,128]{1,0:T(1,128)}', space=vmem, size = 0x12000, scoped, tag = 'internal scratch']
  %s0 = inlined_call_operand.vmem [shape: f32[256,16], index: 0, kind: input, shape index: {}]
  %s1 = inlined_call_operand.vmem [shape: bf16[16,32], index: 1, kind: input, shape index: {}]
  %s2 = inlined_call_operand.vmem [shape: f32[1,32], index: 2, kind: input, shape index: {}]
  %s3 = inlined_call_operand.vmem [shape: bf16[3,32,32], index: 3, kind: input, shape index: {}]
  %s4 = inlined_call_operand.vmem [shape: f32[3,1,32], index: 4, kind: input, shape index: {}]
  %s5 = inlined_call_operand.vmem [shape: f32[1,32], index: 5, kind: input, shape index: {}]
  %s6 = inlined_call_operand.hbm [shape: f32[1,1,256], index: 6, kind: output, shape index: {}]
  %s7 = sld [smem:[#allocation0]]
  $region34: #{_deep_nn_forward.1} parent=0
    _
  %s9 = ssub.s32 1, %s7
  %s10 = scalar_select 0, %s9, %s7
  $region1: #{_deep_nn_forward.1} parent=0
    #allocation2 [shape = 'u8[1024]{0}', space=vmem, size = 0x400, scoped, tag = 'output window, operand 0, single buffered']
    #allocation3 [shape = 's32[1]{0}', space=sflag, size = 0x4, scoped, tag = 'scoped memory for _deep_nn_forward.1']
    %11 = vsyncpa [#allocation3], 0
    // Predicated region
    $region2: #{_deep_nn_forward.1} parent=1 // pred_check
      _
    $region3: #{_deep_nn_forward.1} parent=1 // pred_check_branch
      %13 = sbr.rel (0) target = $region5
    $region4: #{_deep_nn_forward.1} parent=1 // pred_region
      _
    $region5: #{_deep_nn_forward.1} parent=1 // pred_fallthru
      _
    // Predicated region
    $region6: #{_deep_nn_forward.1} parent=1 // pred_check
      _
    $region7: #{_deep_nn_forward.1} parent=1 // pred_check_branch
      %15 = sbr.rel (0) target = $region9
    $region8: #{_deep_nn_forward.1} parent=1 // pred_region
      _
    $region9: #{_deep_nn_forward.1} parent=1 // pred_fallthru
      _
    // Predicated region
    $region10: #{_deep_nn_forward.1} parent=1 // pred_check
      _
    $region11: #{_deep_nn_forward.1} parent=1 // pred_check_branch
      %17 = sbr.rel (0) target = $region13
    $region12: #{_deep_nn_forward.1} parent=1 // pred_region
      _
    $region13: #{_deep_nn_forward.1} parent=1 // pred_fallthru
      _
    // Predicated region
    $region14: #{_deep_nn_forward.1} parent=1 // pred_check
      _
    $region15: #{_deep_nn_forward.1} parent=1 // pred_check_branch
      %19 = sbr.rel (0) target = $region17
    $region16: #{_deep_nn_forward.1} parent=1 // pred_region
      _
    $region17: #{_deep_nn_forward.1} parent=1 // pred_fallthru
      _
    // Predicated region
    $region18: #{_deep_nn_forward.1} parent=1 // pred_check
      _
    $region19: #{_deep_nn_forward.1} parent=1 // pred_check_branch
      %21 = sbr.rel (0) target = $region21
    $region20: #{_deep_nn_forward.1} parent=1 // pred_region
      _
    $region21: #{_deep_nn_forward.1} parent=1 // pred_fallthru
      _
    // Predicated region
    $region22: #{_deep_nn_forward.1} parent=1 // pred_check
      _
    $region23: #{_deep_nn_forward.1} parent=1 // pred_check_branch
      %23 = sbr.rel (0) target = $region25
    $region24: #{_deep_nn_forward.1} parent=1 // pred_region
      _
    $region25: #{_deep_nn_forward.1} parent=1 // pred_fallthru
      _
    %v25 = vld [vmem:[%s0] sm:$0xff]
    %v26 = vld [vmem:[%s0 + $0x8] sm:$0xff]
    %v27 = vld [vmem:[%s0 + $0x10] sm:$0xff]
    %v28 = vld [vmem:[%s0 + $0x18] sm:$0xff]
    %v29 = vld [vmem:[%s0 + $0x20] sm:$0xff]
    %v30 = vld [vmem:[%s0 + $0x28] sm:$0xff]
    %v31 = vld [vmem:[%s0 + $0x30] sm:$0xff]
    %v32 = vld [vmem:[%s0 + $0x38] sm:$0xff]
    %v33 = vld [vmem:[%s0 + $0x40] sm:$0xff]
    %v34 = vld [vmem:[%s0 + $0x48] sm:$0xff]
    %v35 = vld [vmem:[%s0 + $0x50] sm:$0xff]
    %v36 = vld [vmem:[%s0 + $0x58] sm:$0xff]
    %v37 = vld [vmem:[%s0 + $0x60] sm:$0xff]
    %v38 = vld [vmem:[%s0 + $0x68] sm:$0xff]
    %v39 = vld [vmem:[%s0 + $0x70] sm:$0xff]
    %v40 = vld [vmem:[%s0 + $0x78] sm:$0xff]
    %v41 = vld [vmem:[%s0 + $0x80] sm:$0xff]
    %v42 = vld [vmem:[%s0 + $0x88] sm:$0xff]
    %v43 = vld [vmem:[%s0 + $0x90] sm:$0xff]
    %v44 = vld [vmem:[%s0 + $0x98] sm:$0xff]
    %v45 = vld [vmem:[%s0 + $0xa0] sm:$0xff]
    %v46 = vld [vmem:[%s0 + $0xa8] sm:$0xff]
    %v47 = vld [vmem:[%s0 + $0xb0] sm:$0xff]
    %v48 = vld [vmem:[%s0 + $0xb8] sm:$0xff]
    %v49 = vld [vmem:[%s0 + $0xc0] sm:$0xff]
    %v50 = vld [vmem:[%s0 + $0xc8] sm:$0xff]
    %v51 = vld [vmem:[%s0 + $0xd0] sm:$0xff]
    %v52 = vld [vmem:[%s0 + $0xd8] sm:$0xff]
    %v53 = vld [vmem:[%s0 + $0xe0] sm:$0xff]
    %v54 = vld [vmem:[%s0 + $0xe8] sm:$0xff]
    %v55 = vld [vmem:[%s0 + $0xf0] sm:$0xff]
    %v56 = vld [vmem:[%s0 + $0xf8] sm:$0xff]
    %v57 = vpack.c.bf16 %v26, %v25
    %v58 = vpack.c.bf16 %v28, %v27
    %v59 = vpack.c.bf16 %v30, %v29
    %v60 = vpack.c.bf16 %v32, %v31
    %v61 = vpack.c.bf16 %v34, %v33
    %v62 = vpack.c.bf16 %v36, %v35
    %v63 = vpack.c.bf16 %v38, %v37
    %v64 = vpack.c.bf16 %v40, %v39
    %v65 = vpack.c.bf16 %v42, %v41
    %v66 = vpack.c.bf16 %v44, %v43
    %v67 = vpack.c.bf16 %v46, %v45
    %v68 = vpack.c.bf16 %v48, %v47
    %v69 = vpack.c.bf16 %v50, %v49
    %v70 = vpack.c.bf16 %v52, %v51
    %v71 = vpack.c.bf16 %v54, %v53
    %v72 = vpack.c.bf16 %v56, %v55
    %v73 = vld [vmem:[%s1] sm:$0xf]
    %v74 = vld [vmem:[%s1 + $0x4] sm:$0xf]
    %v75 = vld [vmem:[%s2] sm:$0x1]
    %v77 = vlaneseq
    %v78 = vshrl.u32 %v77, 7
    %v79 = vsub.s32 0, %v78
    %v80 = vrot.slane %v75, %v79
    %v84 = vunpack.c.l.b16 %v73
    %v85 = vunpack.c.l.b16 %v74
    %v86 = vpack.c.b16 %v85, %v84
    %vm88 = vcmask 130048
    %v90 = vsel %vm88, %v57, 0
    %v93 = vsel %vm88, %v58, 0
    %v96 = vsel %vm88, %v59, 0
    %v99 = vsel %vm88, %v60, 0
    %v102 = vsel %vm88, %v61, 0
    %v105 = vsel %vm88, %v62, 0
    %v108 = vsel %vm88, %v63, 0
    %v111 = vsel %vm88, %v64, 0
    %v114 = vsel %vm88, %v65, 0
    %v117 = vsel %vm88, %v66, 0
    %v120 = vsel %vm88, %v67, 0
    %v123 = vsel %vm88, %v68, 0
    %v126 = vsel %vm88, %v69, 0
    %v129 = vsel %vm88, %v70, 0
    %v132 = vsel %vm88, %v71, 0
    %v135 = vsel %vm88, %v72, 0
    %137 = vmatprep.subr.bf16.mxu0 0
    %138 = vmatpush1.bf16.msra.mxu0 %v86
    %139 = vmatprep.subr.bf16.mxu0 0
    %140 = vmatpush1.bf16.msra.mxu0 0
    %141 = vmatprep.subr.bf16.mxu0 0
    %142 = vmatpush1.bf16.msra.mxu0 0
    %143 = vmatprep.subr.bf16.mxu0 0
    %144 = vmatpush1.bf16.msra.mxu0 0
    %145 = vmatprep.subr.bf16.mxu0 0
    %146 = vmatpush1.bf16.msra.mxu0 0
    %147 = vmatprep.subr.bf16.mxu0 0
    %148 = vmatpush1.bf16.msra.mxu0 0
    %149 = vmatprep.subr.bf16.mxu0 0
    %150 = vmatpush1.bf16.msra.mxu0 0
    %151 = vmatprep.subr.bf16.mxu0 0
    %152 = vmatpush1.bf16.msra.mxu0 0
    %153 = vmatprep.subr.bf16.mxu0 0
    %154 = vmatpush1.bf16.msra.mxu0 0
    %155 = vmatprep.subr.bf16.mxu0 0
    %156 = vmatpush1.bf16.msra.mxu0 0
    %157 = vmatprep.subr.bf16.mxu0 0
    %158 = vmatpush1.bf16.msra.mxu0 0
    %159 = vmatprep.subr.bf16.mxu0 0
    %160 = vmatpush1.bf16.msra.mxu0 0
    %161 = vmatprep.subr.bf16.mxu0 0
    %162 = vmatpush1.bf16.msra.mxu0 0
    %163 = vmatprep.subr.bf16.mxu0 0
    %164 = vmatpush1.bf16.msra.mxu0 0
    %165 = vmatprep.subr.bf16.mxu0 0
    %166 = vmatpush1.bf16.msra.mxu0 0
    %167 = vmatprep.subr.bf16.mxu0 0
    %168 = vmatpush1.bf16.msra.mxu0 0
    %169 = vmatprep.mubr.bf16.mxu0 0
    %170 = vmatmul.mubr.bf16.gmra.mrb[0].mxu0 %v90
    %v171 = vpop.f32.mrb[0].mxu0
    %v172 = vadd.f32 %v80, %v171
    %v173 = vpop.f32.mrb[0].mxu0
    %v174 = vpop.f32.mrb[0].mxu0
    %v175 = vadd.f32 %v80, %v174
    %v176 = vpop.f32.mrb[0].mxu0
    %177 = vmatprep.mubr.bf16.mxu0 0
    %178 = vmatmul.mubr.bf16.gmra.mrb[0].mxu0 %v93
    %v179 = vpop.f32.mrb[0].mxu0
    %v180 = vadd.f32 %v80, %v179
    %v181 = vpop.f32.mrb[0].mxu0
    %v182 = vpop.f32.mrb[0].mxu0
    %v183 = vadd.f32 %v80, %v182
    %v184 = vpop.f32.mrb[0].mxu0
    %185 = vmatprep.mubr.bf16.mxu0 0
    %186 = vmatmul.mubr.bf16.gmra.mrb[0].mxu0 %v96
    %v187 = vpop.f32.mrb[0].mxu0
    %v188 = vadd.f32 %v80, %v187
    %v189 = vpop.f32.mrb[0].mxu0
    %v190 = vpop.f32.mrb[0].mxu0
    %v191 = vadd.f32 %v80, %v190
    %v192 = vpop.f32.mrb[0].mxu0
    %193 = vmatprep.mubr.bf16.mxu0 0
    %194 = vmatmul.mubr.bf16.gmra.mrb[0].mxu0 %v99
    %v195 = vpop.f32.mrb[0].mxu0
    %v196 = vadd.f32 %v80, %v195
    %v197 = vpop.f32.mrb[0].mxu0
    %v198 = vpop.f32.mrb[0].mxu0
    %v199 = vadd.f32 %v80, %v198
    %v200 = vpop.f32.mrb[0].mxu0
    %201 = vmatprep.mubr.bf16.mxu0 0
    %202 = vmatmul.mubr.bf16.gmra.mrb[0].mxu0 %v102
    %v203 = vpop.f32.mrb[0].mxu0
    %v204 = vadd.f32 %v80, %v203
    %v205 = vpop.f32.mrb[0].mxu0
    %v206 = vpop.f32.mrb[0].mxu0
    %v207 = vadd.f32 %v80, %v206
    %v208 = vpop.f32.mrb[0].mxu0
    %209 = vmatprep.mubr.bf16.mxu0 0
    %210 = vmatmul.mubr.bf16.gmra.mrb[0].mxu0 %v105
    %v211 = vpop.f32.mrb[0].mxu0
    %v212 = vadd.f32 %v80, %v211
    %v213 = vpop.f32.mrb[0].mxu0
    %v214 = vpop.f32.mrb[0].mxu0
    %v215 = vadd.f32 %v80, %v214
    %v216 = vpop.f32.mrb[0].mxu0
    %217 = vmatprep.mubr.bf16.mxu0 0
    %218 = vmatmul.mubr.bf16.gmra.mrb[0].mxu0 %v108
    %v219 = vpop.f32.mrb[0].mxu0
    %v220 = vadd.f32 %v80, %v219
    %v221 = vpop.f32.mrb[0].mxu0
    %v222 = vpop.f32.mrb[0].mxu0
    %v223 = vadd.f32 %v80, %v222
    %v224 = vpop.f32.mrb[0].mxu0
    %225 = vmatprep.mubr.bf16.mxu0 0
    %226 = vmatmul.mubr.bf16.gmra.mrb[0].mxu0 %v111
    %v227 = vpop.f32.mrb[0].mxu0
    %v228 = vadd.f32 %v80, %v227
    %v229 = vpop.f32.mrb[0].mxu0
    %v230 = vpop.f32.mrb[0].mxu0
    %v231 = vadd.f32 %v80, %v230
    %v232 = vpop.f32.mrb[0].mxu0
    %233 = vmatprep.mubr.bf16.mxu0 0
    %234 = vmatmul.mubr.bf16.gmra.mrb[0].mxu0 %v114
    %v235 = vpop.f32.mrb[0].mxu0
    %v236 = vadd.f32 %v80, %v235
    %v237 = vpop.f32.mrb[0].mxu0
    %v238 = vpop.f32.mrb[0].mxu0
    %v239 = vadd.f32 %v80, %v238
    %v240 = vpop.f32.mrb[0].mxu0
    %241 = vmatprep.mubr.bf16.mxu0 0
    %242 = vmatmul.mubr.bf16.gmra.mrb[0].mxu0 %v117
    %v243 = vpop.f32.mrb[0].mxu0
    %v244 = vadd.f32 %v80, %v243
    %v245 = vpop.f32.mrb[0].mxu0
    %v246 = vpop.f32.mrb[0].mxu0
    %v247 = vadd.f32 %v80, %v246
    %v248 = vpop.f32.mrb[0].mxu0
    %249 = vmatprep.mubr.bf16.mxu0 0
    %250 = vmatmul.mubr.bf16.gmra.mrb[0].mxu0 %v120
    %v251 = vpop.f32.mrb[0].mxu0
    %v252 = vadd.f32 %v80, %v251
    %v253 = vpop.f32.mrb[0].mxu0
    %v254 = vpop.f32.mrb[0].mxu0
    %v255 = vadd.f32 %v80, %v254
    %v256 = vpop.f32.mrb[0].mxu0
    %257 = vmatprep.mubr.bf16.mxu0 0
    %258 = vmatmul.mubr.bf16.gmra.mrb[0].mxu0 %v123
    %v259 = vpop.f32.mrb[0].mxu0
    %v260 = vadd.f32 %v80, %v259
    %v261 = vpop.f32.mrb[0].mxu0
    %v262 = vpop.f32.mrb[0].mxu0
    %v263 = vadd.f32 %v80, %v262
    %v264 = vpop.f32.mrb[0].mxu0
    %265 = vmatprep.mubr.bf16.mxu0 0
    %266 = vmatmul.mubr.bf16.gmra.mrb[0].mxu0 %v126
    %v267 = vpop.f32.mrb[0].mxu0
    %v268 = vadd.f32 %v80, %v267
    %v269 = vpop.f32.mrb[0].mxu0
    %v270 = vpop.f32.mrb[0].mxu0
    %v271 = vadd.f32 %v80, %v270
    %v272 = vpop.f32.mrb[0].mxu0
    %273 = vmatprep.mubr.bf16.mxu0 0
    %274 = vmatmul.mubr.bf16.gmra.mrb[0].mxu0 %v129
    %v275 = vpop.f32.mrb[0].mxu0
    %v276 = vadd.f32 %v80, %v275
    %v277 = vpop.f32.mrb[0].mxu0
    %v278 = vpop.f32.mrb[0].mxu0
    %v279 = vadd.f32 %v80, %v278
    %v280 = vpop.f32.mrb[0].mxu0
    %281 = vmatprep.mubr.bf16.mxu0 0
    %282 = vmatmul.mubr.bf16.gmra.mrb[0].mxu0 %v132
    %v283 = vpop.f32.mrb[0].mxu0
    %v284 = vadd.f32 %v80, %v283
    %v285 = vpop.f32.mrb[0].mxu0
    %v286 = vpop.f32.mrb[0].mxu0
    %v287 = vadd.f32 %v80, %v286
    %v288 = vpop.f32.mrb[0].mxu0
    %289 = vmatprep.mubr.bf16.mxu0 0
    %290 = vmatmul.mubr.bf16.gmra.mrb[0].mxu0 %v135
    %v291 = vpop.f32.mrb[0].mxu0
    %v292 = vadd.f32 %v80, %v291
    %v293 = vpop.f32.mrb[0].mxu0
    %v294 = vpop.f32.mrb[0].mxu0
    %v295 = vadd.f32 %v80, %v294
    %v296 = vpop.f32.mrb[0].mxu0
    %297 = vdwg.mxu0
    %v298 = vmax.f32 %v172, 0.0
    %v299 = vmax.f32 %v175, 0.0
    %v300 = vmax.f32 %v180, 0.0
    %v301 = vmax.f32 %v183, 0.0
    %v302 = vmax.f32 %v188, 0.0
    %v303 = vmax.f32 %v191, 0.0
    %v304 = vmax.f32 %v196, 0.0
    %v305 = vmax.f32 %v199, 0.0
    %v306 = vmax.f32 %v204, 0.0
    %v307 = vmax.f32 %v207, 0.0
    %v308 = vmax.f32 %v212, 0.0
    %v309 = vmax.f32 %v215, 0.0
    %v310 = vmax.f32 %v220, 0.0
    %v311 = vmax.f32 %v223, 0.0
    %v312 = vmax.f32 %v228, 0.0
    %v313 = vmax.f32 %v231, 0.0
    %v314 = vmax.f32 %v236, 0.0
    %v315 = vmax.f32 %v239, 0.0
    %v316 = vmax.f32 %v244, 0.0
    %v317 = vmax.f32 %v247, 0.0
    %v318 = vmax.f32 %v252, 0.0
    %v319 = vmax.f32 %v255, 0.0
    %v320 = vmax.f32 %v260, 0.0
    %v321 = vmax.f32 %v263, 0.0
    %v322 = vmax.f32 %v268, 0.0
    %v323 = vmax.f32 %v271, 0.0
    %v324 = vmax.f32 %v276, 0.0
    %v325 = vmax.f32 %v279, 0.0
    %v326 = vmax.f32 %v284, 0.0
    %v327 = vmax.f32 %v287, 0.0
    %v328 = vmax.f32 %v292, 0.0
    %v329 = vmax.f32 %v295, 0.0
    %v330 = vpack.c.bf16 %v299, %v298
    %v331 = vpack.c.bf16 %v301, %v300
    %v332 = vpack.c.bf16 %v303, %v302
    %v333 = vpack.c.bf16 %v305, %v304
    %v334 = vpack.c.bf16 %v307, %v306
    %v335 = vpack.c.bf16 %v309, %v308
    %v336 = vpack.c.bf16 %v311, %v310
    %v337 = vpack.c.bf16 %v313, %v312
    %v338 = vpack.c.bf16 %v315, %v314
    %v339 = vpack.c.bf16 %v317, %v316
    %v340 = vpack.c.bf16 %v319, %v318
    %v341 = vpack.c.bf16 %v321, %v320
    %v342 = vpack.c.bf16 %v323, %v322
    %v343 = vpack.c.bf16 %v325, %v324
    %v344 = vpack.c.bf16 %v327, %v326
    %v345 = vpack.c.bf16 %v329, %v328
    %v346 = vld [vmem:[%s3] sm:$0xf]
    %v347 = vld [vmem:[%s3 + $0x4] sm:$0xf]
    %v348 = vld [vmem:[%s3 + $0x8] sm:$0xf]
    %v349 = vld [vmem:[%s3 + $0xc] sm:$0xf]
    %v350 = vld [vmem:[%s4] sm:$0x1]
    %v352 = vlaneseq
    %v353 = vshrl.u32 %v352, 7
    %v354 = vsub.s32 0, %v353
    %v355 = vrot.slane %v350, %v354
    %v361 = vunpack.c.l.b16 %v346
    %v362 = vunpack.c.l.b16 %v347
    %v363 = vunpack.c.l.b16 %v348
    %v364 = vunpack.c.l.b16 %v349
    %v365 = vpack.c.b16 %v362, %v361
    %v366 = vpack.c.b16 %v364, %v363
    %vm369 = vcmask 261120
    %v371 = vsel %vm369, %v330, 0
    %v374 = vsel %vm369, %v331, 0
    %v377 = vsel %vm369, %v332, 0
    %v380 = vsel %vm369, %v333, 0
    %v383 = vsel %vm369, %v334, 0
    %v386 = vsel %vm369, %v335, 0
    %v389 = vsel %vm369, %v336, 0
    %v392 = vsel %vm369, %v337, 0
    %v395 = vsel %vm369, %v338, 0
    %v398 = vsel %vm369, %v339, 0
    %v401 = vsel %vm369, %v340, 0
    %v404 = vsel %vm369, %v341, 0
    %v407 = vsel %vm369, %v342, 0
    %v410 = vsel %vm369, %v343, 0
    %v413 = vsel %vm369, %v344, 0
    %v416 = vsel %vm369, %v345, 0
    %418 = vmatprep.subr.bf16.mxu0 0
    %419 = vmatpush1.bf16.msra.mxu0 %v365
    %420 = vmatprep.subr.bf16.mxu0 0
    %421 = vmatpush1.bf16.msra.mxu0 %v366
    %422 = vmatprep.subr.bf16.mxu0 0
    %423 = vmatpush1.bf16.msra.mxu0 0
    %424 = vmatprep.subr.bf16.mxu0 0
    %425 = vmatpush1.bf16.msra.mxu0 0
    %426 = vmatprep.subr.bf16.mxu0 0
    %427 = vmatpush1.bf16.msra.mxu0 0
    %428 = vmatprep.subr.bf16.mxu0 0
    %429 = vmatpush1.bf16.msra.mxu0 0
    %430 = vmatprep.subr.bf16.mxu0 0
    %431 = vmatpush1.bf16.msra.mxu0 0
    %432 = vmatprep.subr.bf16.mxu0 0
    %433 = vmatpush1.bf16.msra.mxu0 0
    %434 = vmatprep.subr.bf16.mxu0 0
    %435 = vmatpush1.bf16.msra.mxu0 0
    %436 = vmatprep.subr.bf16.mxu0 0
    %437 = vmatpush1.bf16.msra.mxu0 0
    %438 = vmatprep.subr.bf16.mxu0 0
    %439 = vmatpush1.bf16.msra.mxu0 0
    %440 = vmatprep.subr.bf16.mxu0 0
    %441 = vmatpush1.bf16.msra.mxu0 0
    %442 = vmatprep.subr.bf16.mxu0 0
    %443 = vmatpush1.bf16.msra.mxu0 0
    %444 = vmatprep.subr.bf16.mxu0 0
    %445 = vmatpush1.bf16.msra.mxu0 0
    %446 = vmatprep.subr.bf16.mxu0 0
    %447 = vmatpush1.bf16.msra.mxu0 0
    %448 = vmatprep.subr.bf16.mxu0 0
    %449 = vmatpush1.bf16.msra.mxu0 0
    %450 = vmatprep.mubr.bf16.mxu0 0
    %451 = vmatmul.mubr.bf16.gmra.mrb[0].mxu0 %v371
    %v452 = vpop.f32.mrb[0].mxu0
    %v453 = vadd.f32 %v355, %v452
    %v454 = vpop.f32.mrb[0].mxu0
    %v455 = vpop.f32.mrb[0].mxu0
    %v456 = vadd.f32 %v355, %v455
    %v457 = vpop.f32.mrb[0].mxu0
    %458 = vmatprep.mubr.bf16.mxu0 0
    %459 = vmatmul.mubr.bf16.gmra.mrb[0].mxu0 %v374
    %v460 = vpop.f32.mrb[0].mxu0
    %v461 = vadd.f32 %v355, %v460
    %v462 = vpop.f32.mrb[0].mxu0
    %v463 = vpop.f32.mrb[0].mxu0
    %v464 = vadd.f32 %v355, %v463
    %v465 = vpop.f32.mrb[0].mxu0
    %466 = vmatprep.mubr.bf16.mxu0 0
    %467 = vmatmul.mubr.bf16.gmra.mrb[0].mxu0 %v377
    %v468 = vpop.f32.mrb[0].mxu0
    %v469 = vadd.f32 %v355, %v468
    %v470 = vpop.f32.mrb[0].mxu0
    %v471 = vpop.f32.mrb[0].mxu0
    %v472 = vadd.f32 %v355, %v471
    %v473 = vpop.f32.mrb[0].mxu0
    %474 = vmatprep.mubr.bf16.mxu0 0
    %475 = vmatmul.mubr.bf16.gmra.mrb[0].mxu0 %v380
    %v476 = vpop.f32.mrb[0].mxu0
    %v477 = vadd.f32 %v355, %v476
    %v478 = vpop.f32.mrb[0].mxu0
    %v479 = vpop.f32.mrb[0].mxu0
    %v480 = vadd.f32 %v355, %v479
    %v481 = vpop.f32.mrb[0].mxu0
    %482 = vmatprep.mubr.bf16.mxu0 0
    %483 = vmatmul.mubr.bf16.gmra.mrb[0].mxu0 %v383
    %v484 = vpop.f32.mrb[0].mxu0
    %v485 = vadd.f32 %v355, %v484
    %v486 = vpop.f32.mrb[0].mxu0
    %v487 = vpop.f32.mrb[0].mxu0
    %v488 = vadd.f32 %v355, %v487
    %v489 = vpop.f32.mrb[0].mxu0
    %490 = vmatprep.mubr.bf16.mxu0 0
    %491 = vmatmul.mubr.bf16.gmra.mrb[0].mxu0 %v386
    %v492 = vpop.f32.mrb[0].mxu0
    %v493 = vadd.f32 %v355, %v492
    %v494 = vpop.f32.mrb[0].mxu0
    %v495 = vpop.f32.mrb[0].mxu0
    %v496 = vadd.f32 %v355, %v495
    %v497 = vpop.f32.mrb[0].mxu0
    %498 = vmatprep.mubr.bf16.mxu0 0
    %499 = vmatmul.mubr.bf16.gmra.mrb[0].mxu0 %v389
    %v500 = vpop.f32.mrb[0].mxu0
    %v501 = vadd.f32 %v355, %v500
    %v502 = vpop.f32.mrb[0].mxu0
    %v503 = vpop.f32.mrb[0].mxu0
    %v504 = vadd.f32 %v355, %v503
    %v505 = vpop.f32.mrb[0].mxu0
    %506 = vmatprep.mubr.bf16.mxu0 0
    %507 = vmatmul.mubr.bf16.gmra.mrb[0].mxu0 %v392
    %v508 = vpop.f32.mrb[0].mxu0
    %v509 = vadd.f32 %v355, %v508
    %v510 = vpop.f32.mrb[0].mxu0
    %v511 = vpop.f32.mrb[0].mxu0
    %v512 = vadd.f32 %v355, %v511
    %v513 = vpop.f32.mrb[0].mxu0
    %514 = vmatprep.mubr.bf16.mxu0 0
    %515 = vmatmul.mubr.bf16.gmra.mrb[0].mxu0 %v395
    %v516 = vpop.f32.mrb[0].mxu0
    %v517 = vadd.f32 %v355, %v516
    %v518 = vpop.f32.mrb[0].mxu0
    %v519 = vpop.f32.mrb[0].mxu0
    %v520 = vadd.f32 %v355, %v519
    %v521 = vpop.f32.mrb[0].mxu0
    %522 = vmatprep.mubr.bf16.mxu0 0
    %523 = vmatmul.mubr.bf16.gmra.mrb[0].mxu0 %v398
    %v524 = vpop.f32.mrb[0].mxu0
    %v525 = vadd.f32 %v355, %v524
    %v526 = vpop.f32.mrb[0].mxu0
    %v527 = vpop.f32.mrb[0].mxu0
    %v528 = vadd.f32 %v355, %v527
    %v529 = vpop.f32.mrb[0].mxu0
    %530 = vmatprep.mubr.bf16.mxu0 0
    %531 = vmatmul.mubr.bf16.gmra.mrb[0].mxu0 %v401
    %v532 = vpop.f32.mrb[0].mxu0
    %v533 = vadd.f32 %v355, %v532
    %v534 = vpop.f32.mrb[0].mxu0
    %v535 = vpop.f32.mrb[0].mxu0
    %v536 = vadd.f32 %v355, %v535
    %v537 = vpop.f32.mrb[0].mxu0
    %538 = vmatprep.mubr.bf16.mxu0 0
    %539 = vmatmul.mubr.bf16.gmra.mrb[0].mxu0 %v404
    %v540 = vpop.f32.mrb[0].mxu0
    %v541 = vadd.f32 %v355, %v540
    %v542 = vpop.f32.mrb[0].mxu0
    %v543 = vpop.f32.mrb[0].mxu0
    %v544 = vadd.f32 %v355, %v543
    %v545 = vpop.f32.mrb[0].mxu0
    %546 = vmatprep.mubr.bf16.mxu0 0
    %547 = vmatmul.mubr.bf16.gmra.mrb[0].mxu0 %v407
    %v548 = vpop.f32.mrb[0].mxu0
    %v549 = vadd.f32 %v355, %v548
    %v550 = vpop.f32.mrb[0].mxu0
    %v551 = vpop.f32.mrb[0].mxu0
    %v552 = vadd.f32 %v355, %v551
    %v553 = vpop.f32.mrb[0].mxu0
    %554 = vmatprep.mubr.bf16.mxu0 0
    %555 = vmatmul.mubr.bf16.gmra.mrb[0].mxu0 %v410
    %v556 = vpop.f32.mrb[0].mxu0
    %v557 = vadd.f32 %v355, %v556
    %v558 = vpop.f32.mrb[0].mxu0
    %v559 = vpop.f32.mrb[0].mxu0
    %v560 = vadd.f32 %v355, %v559
    %v561 = vpop.f32.mrb[0].mxu0
    %562 = vmatprep.mubr.bf16.mxu0 0
    %563 = vmatmul.mubr.bf16.gmra.mrb[0].mxu0 %v413
    %v564 = vpop.f32.mrb[0].mxu0
    %v565 = vadd.f32 %v355, %v564
    %v566 = vpop.f32.mrb[0].mxu0
    %v567 = vpop.f32.mrb[0].mxu0
    %v568 = vadd.f32 %v355, %v567
    %v569 = vpop.f32.mrb[0].mxu0
    %570 = vmatprep.mubr.bf16.mxu0 0
    %571 = vmatmul.mubr.bf16.gmra.mrb[0].mxu0 %v416
    %v572 = vpop.f32.mrb[0].mxu0
    %v573 = vadd.f32 %v355, %v572
    %v574 = vpop.f32.mrb[0].mxu0
    %v575 = vpop.f32.mrb[0].mxu0
    %v576 = vadd.f32 %v355, %v575
    %v577 = vpop.f32.mrb[0].mxu0
    %578 = vdwg.mxu0
    %v579 = vmax.f32 %v453, 0.0
    %v580 = vmax.f32 %v456, 0.0
    %v581 = vmax.f32 %v461, 0.0
    %v582 = vmax.f32 %v464, 0.0
    %v583 = vmax.f32 %v469, 0.0
    %v584 = vmax.f32 %v472, 0.0
    %v585 = vmax.f32 %v477, 0.0
    %v586 = vmax.f32 %v480, 0.0
    %v587 = vmax.f32 %v485, 0.0
    %v588 = vmax.f32 %v488, 0.0
    %v589 = vmax.f32 %v493, 0.0
    %v590 = vmax.f32 %v496, 0.0
    %v591 = vmax.f32 %v501, 0.0
    %v592 = vmax.f32 %v504, 0.0
    %v593 = vmax.f32 %v509, 0.0
    %v594 = vmax.f32 %v512, 0.0
    %v595 = vmax.f32 %v517, 0.0
    %v596 = vmax.f32 %v520, 0.0
    %v597 = vmax.f32 %v525, 0.0
    %v598 = vmax.f32 %v528, 0.0
    %v599 = vmax.f32 %v533, 0.0
    %v600 = vmax.f32 %v536, 0.0
    %v601 = vmax.f32 %v541, 0.0
    %v602 = vmax.f32 %v544, 0.0
    %v603 = vmax.f32 %v549, 0.0
    %v604 = vmax.f32 %v552, 0.0
    %v605 = vmax.f32 %v557, 0.0
    %v606 = vmax.f32 %v560, 0.0
    %v607 = vmax.f32 %v565, 0.0
    %v608 = vmax.f32 %v568, 0.0
    %v609 = vmax.f32 %v573, 0.0
    %v610 = vmax.f32 %v576, 0.0
    %v611 = vpack.c.bf16 %v580, %v579
    %v612 = vpack.c.bf16 %v582, %v581
    %v613 = vpack.c.bf16 %v584, %v583
    %v614 = vpack.c.bf16 %v586, %v585
    %v615 = vpack.c.bf16 %v588, %v587
    %v616 = vpack.c.bf16 %v590, %v589
    %v617 = vpack.c.bf16 %v592, %v591
    %v618 = vpack.c.bf16 %v594, %v593
    %v619 = vpack.c.bf16 %v596, %v595
    %v620 = vpack.c.bf16 %v598, %v597
    %v621 = vpack.c.bf16 %v600, %v599
    %v622 = vpack.c.bf16 %v602, %v601
    %v623 = vpack.c.bf16 %v604, %v603
    %v624 = vpack.c.bf16 %v606, %v605
    %v625 = vpack.c.bf16 %v608, %v607
    %v626 = vpack.c.bf16 %v610, %v609
    %s627 = scalar_lea.vmem %s3, 16
    %v628 = vld [vmem:[%s627] sm:$0xf]
    %v629 = vld [vmem:[%s627 + $0x4] sm:$0xf]
    %v630 = vld [vmem:[%s627 + $0x8] sm:$0xf]
    %v631 = vld [vmem:[%s627 + $0xc] sm:$0xf]
    %s632 = scalar_lea.vmem %s4, 1
    %v633 = vld [vmem:[%s632] sm:$0x1]
    %v635 = vlaneseq
    %v636 = vshrl.u32 %v635, 7
    %v637 = vsub.s32 0, %v636
    %v638 = vrot.slane %v633, %v637
    %v644 = vunpack.c.l.b16 %v628
    %v645 = vunpack.c.l.b16 %v629
    %v646 = vunpack.c.l.b16 %v630
    %v647 = vunpack.c.l.b16 %v631
    %v648 = vpack.c.b16 %v645, %v644
    %v649 = vpack.c.b16 %v647, %v646
    %v653 = vsel %vm369, %v611, 0
    %v656 = vsel %vm369, %v612, 0
    %v659 = vsel %vm369, %v613, 0
    %v662 = vsel %vm369, %v614, 0
    %v665 = vsel %vm369, %v615, 0
    %v668 = vsel %vm369, %v616, 0
    %v671 = vsel %vm369, %v617, 0
    %v674 = vsel %vm369, %v618, 0
    %v677 = vsel %vm369, %v619, 0
    %v680 = vsel %vm369, %v620, 0
    %v683 = vsel %vm369, %v621, 0
    %v686 = vsel %vm369, %v622, 0
    %v689 = vsel %vm369, %v623, 0
    %v692 = vsel %vm369, %v624, 0
    %v695 = vsel %vm369, %v625, 0
    %v698 = vsel %vm369, %v626, 0
    %700 = vmatprep.subr.bf16.mxu0 0
    %701 = vmatpush1.bf16.msra.mxu0 %v648
    %702 = vmatprep.subr.bf16.mxu0 0
    %703 = vmatpush1.bf16.msra.mxu0 %v649
    %704 = vmatprep.subr.bf16.mxu0 0
    %705 = vmatpush1.bf16.msra.mxu0 0
    %706 = vmatprep.subr.bf16.mxu0 0
    %707 = vmatpush1.bf16.msra.mxu0 0
    %708 = vmatprep.subr.bf16.mxu0 0
    %709 = vmatpush1.bf16.msra.mxu0 0
    %710 = vmatprep.subr.bf16.mxu0 0
    %711 = vmatpush1.bf16.msra.mxu0 0
    %712 = vmatprep.subr.bf16.mxu0 0
    %713 = vmatpush1.bf16.msra.mxu0 0
    %714 = vmatprep.subr.bf16.mxu0 0
    %715 = vmatpush1.bf16.msra.mxu0 0
    %716 = vmatprep.subr.bf16.mxu0 0
    %717 = vmatpush1.bf16.msra.mxu0 0
    %718 = vmatprep.subr.bf16.mxu0 0
    %719 = vmatpush1.bf16.msra.mxu0 0
    %720 = vmatprep.subr.bf16.mxu0 0
    %721 = vmatpush1.bf16.msra.mxu0 0
    %722 = vmatprep.subr.bf16.mxu0 0
    %723 = vmatpush1.bf16.msra.mxu0 0
    %724 = vmatprep.subr.bf16.mxu0 0
    %725 = vmatpush1.bf16.msra.mxu0 0
    %726 = vmatprep.subr.bf16.mxu0 0
    %727 = vmatpush1.bf16.msra.mxu0 0
    %728 = vmatprep.subr.bf16.mxu0 0
    %729 = vmatpush1.bf16.msra.mxu0 0
    %730 = vmatprep.subr.bf16.mxu0 0
    %731 = vmatpush1.bf16.msra.mxu0 0
    %732 = vmatprep.mubr.bf16.mxu0 0
    %733 = vmatmul.mubr.bf16.gmra.mrb[0].mxu0 %v653
    %v734 = vpop.f32.mrb[0].mxu0
    %v735 = vadd.f32 %v638, %v734
    %v736 = vpop.f32.mrb[0].mxu0
    %v737 = vpop.f32.mrb[0].mxu0
    %v738 = vadd.f32 %v638, %v737
    %v739 = vpop.f32.mrb[0].mxu0
    %740 = vmatprep.mubr.bf16.mxu0 0
    %741 = vmatmul.mubr.bf16.gmra.mrb[0].mxu0 %v656
    %v742 = vpop.f32.mrb[0].mxu0
    %v743 = vadd.f32 %v638, %v742
    %v744 = vpop.f32.mrb[0].mxu0
    %v745 = vpop.f32.mrb[0].mxu0
    %v746 = vadd.f32 %v638, %v745
    %v747 = vpop.f32.mrb[0].mxu0
    %748 = vmatprep.mubr.bf16.mxu0 0
    %749 = vmatmul.mubr.bf16.gmra.mrb[0].mxu0 %v659
    %v750 = vpop.f32.mrb[0].mxu0
    %v751 = vadd.f32 %v638, %v750
    %v752 = vpop.f32.mrb[0].mxu0
    %v753 = vpop.f32.mrb[0].mxu0
    %v754 = vadd.f32 %v638, %v753
    %v755 = vpop.f32.mrb[0].mxu0
    %756 = vmatprep.mubr.bf16.mxu0 0
    %757 = vmatmul.mubr.bf16.gmra.mrb[0].mxu0 %v662
    %v758 = vpop.f32.mrb[0].mxu0
    %v759 = vadd.f32 %v638, %v758
    %v760 = vpop.f32.mrb[0].mxu0
    %v761 = vpop.f32.mrb[0].mxu0
    %v762 = vadd.f32 %v638, %v761
    %v763 = vpop.f32.mrb[0].mxu0
    %764 = vmatprep.mubr.bf16.mxu0 0
    %765 = vmatmul.mubr.bf16.gmra.mrb[0].mxu0 %v665
    %v766 = vpop.f32.mrb[0].mxu0
    %v767 = vadd.f32 %v638, %v766
    %v768 = vpop.f32.mrb[0].mxu0
    %v769 = vpop.f32.mrb[0].mxu0
    %v770 = vadd.f32 %v638, %v769
    %v771 = vpop.f32.mrb[0].mxu0
    %772 = vmatprep.mubr.bf16.mxu0 0
    %773 = vmatmul.mubr.bf16.gmra.mrb[0].mxu0 %v668
    %v774 = vpop.f32.mrb[0].mxu0
    %v775 = vadd.f32 %v638, %v774
    %v776 = vpop.f32.mrb[0].mxu0
    %v777 = vpop.f32.mrb[0].mxu0
    %v778 = vadd.f32 %v638, %v777
    %v779 = vpop.f32.mrb[0].mxu0
    %780 = vmatprep.mubr.bf16.mxu0 0
    %781 = vmatmul.mubr.bf16.gmra.mrb[0].mxu0 %v671
    %v782 = vpop.f32.mrb[0].mxu0
    %v783 = vadd.f32 %v638, %v782
    %v784 = vpop.f32.mrb[0].mxu0
    %v785 = vpop.f32.mrb[0].mxu0
    %v786 = vadd.f32 %v638, %v785
    %v787 = vpop.f32.mrb[0].mxu0
    %788 = vmatprep.mubr.bf16.mxu0 0
    %789 = vmatmul.mubr.bf16.gmra.mrb[0].mxu0 %v674
    %v790 = vpop.f32.mrb[0].mxu0
    %v791 = vadd.f32 %v638, %v790
    %v792 = vpop.f32.mrb[0].mxu0
    %v793 = vpop.f32.mrb[0].mxu0
    %v794 = vadd.f32 %v638, %v793
    %v795 = vpop.f32.mrb[0].mxu0
    %796 = vmatprep.mubr.bf16.mxu0 0
    %797 = vmatmul.mubr.bf16.gmra.mrb[0].mxu0 %v677
    %v798 = vpop.f32.mrb[0].mxu0
    %v799 = vadd.f32 %v638, %v798
    %v800 = vpop.f32.mrb[0].mxu0
    %v801 = vpop.f32.mrb[0].mxu0
    %v802 = vadd.f32 %v638, %v801
    %v803 = vpop.f32.mrb[0].mxu0
    %804 = vmatprep.mubr.bf16.mxu0 0
    %805 = vmatmul.mubr.bf16.gmra.mrb[0].mxu0 %v680
    %v806 = vpop.f32.mrb[0].mxu0
    %v807 = vadd.f32 %v638, %v806
    %v808 = vpop.f32.mrb[0].mxu0
    %v809 = vpop.f32.mrb[0].mxu0
    %v810 = vadd.f32 %v638, %v809
    %v811 = vpop.f32.mrb[0].mxu0
    %812 = vmatprep.mubr.bf16.mxu0 0
    %813 = vmatmul.mubr.bf16.gmra.mrb[0].mxu0 %v683
    %v814 = vpop.f32.mrb[0].mxu0
    %v815 = vadd.f32 %v638, %v814
    %v816 = vpop.f32.mrb[0].mxu0
    %v817 = vpop.f32.mrb[0].mxu0
    %v818 = vadd.f32 %v638, %v817
    %v819 = vpop.f32.mrb[0].mxu0
    %820 = vmatprep.mubr.bf16.mxu0 0
    %821 = vmatmul.mubr.bf16.gmra.mrb[0].mxu0 %v686
    %v822 = vpop.f32.mrb[0].mxu0
    %v823 = vadd.f32 %v638, %v822
    %v824 = vpop.f32.mrb[0].mxu0
    %v825 = vpop.f32.mrb[0].mxu0
    %v826 = vadd.f32 %v638, %v825
    %v827 = vpop.f32.mrb[0].mxu0
    %828 = vmatprep.mubr.bf16.mxu0 0
    %829 = vmatmul.mubr.bf16.gmra.mrb[0].mxu0 %v689
    %v830 = vpop.f32.mrb[0].mxu0
    %v831 = vadd.f32 %v638, %v830
    %v832 = vpop.f32.mrb[0].mxu0
    %v833 = vpop.f32.mrb[0].mxu0
    %v834 = vadd.f32 %v638, %v833
    %v835 = vpop.f32.mrb[0].mxu0
    %836 = vmatprep.mubr.bf16.mxu0 0
    %837 = vmatmul.mubr.bf16.gmra.mrb[0].mxu0 %v692
    %v838 = vpop.f32.mrb[0].mxu0
    %v839 = vadd.f32 %v638, %v838
    %v840 = vpop.f32.mrb[0].mxu0
    %v841 = vpop.f32.mrb[0].mxu0
    %v842 = vadd.f32 %v638, %v841
    %v843 = vpop.f32.mrb[0].mxu0
    %844 = vmatprep.mubr.bf16.mxu0 0
    %845 = vmatmul.mubr.bf16.gmra.mrb[0].mxu0 %v695
    %v846 = vpop.f32.mrb[0].mxu0
    %v847 = vadd.f32 %v638, %v846
    %v848 = vpop.f32.mrb[0].mxu0
    %v849 = vpop.f32.mrb[0].mxu0
    %v850 = vadd.f32 %v638, %v849
    %v851 = vpop.f32.mrb[0].mxu0
    %852 = vmatprep.mubr.bf16.mxu0 0
    %853 = vmatmul.mubr.bf16.gmra.mrb[0].mxu0 %v698
    %v854 = vpop.f32.mrb[0].mxu0
    %v855 = vadd.f32 %v638, %v854
    %v856 = vpop.f32.mrb[0].mxu0
    %v857 = vpop.f32.mrb[0].mxu0
    %v858 = vadd.f32 %v638, %v857
    %v859 = vpop.f32.mrb[0].mxu0
    %860 = vdwg.mxu0
    %v861 = vmax.f32 %v735, 0.0
    %v862 = vmax.f32 %v738, 0.0
    %v863 = vmax.f32 %v743, 0.0
    %v864 = vmax.f32 %v746, 0.0
    %v865 = vmax.f32 %v751, 0.0
    %v866 = vmax.f32 %v754, 0.0
    %v867 = vmax.f32 %v759, 0.0
    %v868 = vmax.f32 %v762, 0.0
    %v869 = vmax.f32 %v767, 0.0
    %v870 = vmax.f32 %v770, 0.0
    %v871 = vmax.f32 %v775, 0.0
    %v872 = vmax.f32 %v778, 0.0
    %v873 = vmax.f32 %v783, 0.0
    %v874 = vmax.f32 %v786, 0.0
    %v875 = vmax.f32 %v791, 0.0
    %v876 = vmax.f32 %v794, 0.0
    %v877 = vmax.f32 %v799, 0.0
    %v878 = vmax.f32 %v802, 0.0
    %v879 = vmax.f32 %v807, 0.0
    %v880 = vmax.f32 %v810, 0.0
    %v881 = vmax.f32 %v815, 0.0
    %v882 = vmax.f32 %v818, 0.0
    %v883 = vmax.f32 %v823, 0.0
    %v884 = vmax.f32 %v826, 0.0
    %v885 = vmax.f32 %v831, 0.0
    %v886 = vmax.f32 %v834, 0.0
    %v887 = vmax.f32 %v839, 0.0
    %v888 = vmax.f32 %v842, 0.0
    %v889 = vmax.f32 %v847, 0.0
    %v890 = vmax.f32 %v850, 0.0
    %v891 = vmax.f32 %v855, 0.0
    %v892 = vmax.f32 %v858, 0.0
    %v893 = vpack.c.bf16 %v862, %v861
    %v894 = vpack.c.bf16 %v864, %v863
    %v895 = vpack.c.bf16 %v866, %v865
    %v896 = vpack.c.bf16 %v868, %v867
    %v897 = vpack.c.bf16 %v870, %v869
    %v898 = vpack.c.bf16 %v872, %v871
    %v899 = vpack.c.bf16 %v874, %v873
    %v900 = vpack.c.bf16 %v876, %v875
    %v901 = vpack.c.bf16 %v878, %v877
    %v902 = vpack.c.bf16 %v880, %v879
    %v903 = vpack.c.bf16 %v882, %v881
    %v904 = vpack.c.bf16 %v884, %v883
    %v905 = vpack.c.bf16 %v886, %v885
    %v906 = vpack.c.bf16 %v888, %v887
    %v907 = vpack.c.bf16 %v890, %v889
    %v908 = vpack.c.bf16 %v892, %v891
    %s909 = scalar_lea.vmem %s3, 32
    %v910 = vld [vmem:[%s909] sm:$0xf]
    %v911 = vld [vmem:[%s909 + $0x4] sm:$0xf]
    %v912 = vld [vmem:[%s909 + $0x8] sm:$0xf]
    %v913 = vld [vmem:[%s909 + $0xc] sm:$0xf]
    %s914 = scalar_lea.vmem %s4, 2
    %v915 = vld [vmem:[%s914] sm:$0x1]
    %v917 = vlaneseq
    %v918 = vshrl.u32 %v917, 7
    %v919 = vsub.s32 0, %v918
    %v920 = vrot.slane %v915, %v919
    %v926 = vunpack.c.l.b16 %v910
    %v927 = vunpack.c.l.b16 %v911
    %v928 = vunpack.c.l.b16 %v912
    %v929 = vunpack.c.l.b16 %v913
    %v930 = vpack.c.b16 %v927, %v926
    %v931 = vpack.c.b16 %v929, %v928
    %v935 = vsel %vm369, %v893, 0
    %v938 = vsel %vm369, %v894, 0
    %v941 = vsel %vm369, %v895, 0
    %v944 = vsel %vm369, %v896, 0
    %v947 = vsel %vm369, %v897, 0
    %v950 = vsel %vm369, %v898, 0
    %v953 = vsel %vm369, %v899, 0
    %v956 = vsel %vm369, %v900, 0
    %v959 = vsel %vm369, %v901, 0
    %v962 = vsel %vm369, %v902, 0
    %v965 = vsel %vm369, %v903, 0
    %v968 = vsel %vm369, %v904, 0
    %v971 = vsel %vm369, %v905, 0
    %v974 = vsel %vm369, %v906, 0
    %v977 = vsel %vm369, %v907, 0
    %v980 = vsel %vm369, %v908, 0
    %982 = vmatprep.subr.bf16.mxu0 0
    %983 = vmatpush1.bf16.msra.mxu0 %v930
    %984 = vmatprep.subr.bf16.mxu0 0
    %985 = vmatpush1.bf16.msra.mxu0 %v931
    %986 = vmatprep.subr.bf16.mxu0 0
    %987 = vmatpush1.bf16.msra.mxu0 0
    %988 = vmatprep.subr.bf16.mxu0 0
    %989 = vmatpush1.bf16.msra.mxu0 0
    %990 = vmatprep.subr.bf16.mxu0 0
    %991 = vmatpush1.bf16.msra.mxu0 0
    %992 = vmatprep.subr.bf16.mxu0 0
    %993 = vmatpush1.bf16.msra.mxu0 0
    %994 = vmatprep.subr.bf16.mxu0 0
    %995 = vmatpush1.bf16.msra.mxu0 0
    %996 = vmatprep.subr.bf16.mxu0 0
    %997 = vmatpush1.bf16.msra.mxu0 0
    %998 = vmatprep.subr.bf16.mxu0 0
    %999 = vmatpush1.bf16.msra.mxu0 0
    %1000 = vmatprep.subr.bf16.mxu0 0
    %1001 = vmatpush1.bf16.msra.mxu0 0
    %1002 = vmatprep.subr.bf16.mxu0 0
    %1003 = vmatpush1.bf16.msra.mxu0 0
    %1004 = vmatprep.subr.bf16.mxu0 0
    %1005 = vmatpush1.bf16.msra.mxu0 0
    %1006 = vmatprep.subr.bf16.mxu0 0
    %1007 = vmatpush1.bf16.msra.mxu0 0
    %1008 = vmatprep.subr.bf16.mxu0 0
    %1009 = vmatpush1.bf16.msra.mxu0 0
    %1010 = vmatprep.subr.bf16.mxu0 0
    %1011 = vmatpush1.bf16.msra.mxu0 0
    %1012 = vmatprep.subr.bf16.mxu0 0
    %1013 = vmatpush1.bf16.msra.mxu0 0
    %1014 = vmatprep.mubr.bf16.mxu0 0
    %1015 = vmatmul.mubr.bf16.gmra.mrb[0].mxu0 %v935
    %v1016 = vpop.f32.mrb[0].mxu0
    %v1017 = vadd.f32 %v920, %v1016
    %v1018 = vpop.f32.mrb[0].mxu0
    %v1019 = vpop.f32.mrb[0].mxu0
    %v1020 = vadd.f32 %v920, %v1019
    %v1021 = vpop.f32.mrb[0].mxu0
    %1022 = vmatprep.mubr.bf16.mxu0 0
    %1023 = vmatmul.mubr.bf16.gmra.mrb[0].mxu0 %v938
    %v1024 = vpop.f32.mrb[0].mxu0
    %v1025 = vadd.f32 %v920, %v1024
    %v1026 = vpop.f32.mrb[0].mxu0
    %v1027 = vpop.f32.mrb[0].mxu0
    %v1028 = vadd.f32 %v920, %v1027
    %v1029 = vpop.f32.mrb[0].mxu0
    %1030 = vmatprep.mubr.bf16.mxu0 0
    %1031 = vmatmul.mubr.bf16.gmra.mrb[0].mxu0 %v941
    %v1032 = vpop.f32.mrb[0].mxu0
    %v1033 = vadd.f32 %v920, %v1032
    %v1034 = vpop.f32.mrb[0].mxu0
    %v1035 = vpop.f32.mrb[0].mxu0
    %v1036 = vadd.f32 %v920, %v1035
    %v1037 = vpop.f32.mrb[0].mxu0
    %1038 = vmatprep.mubr.bf16.mxu0 0
    %1039 = vmatmul.mubr.bf16.gmra.mrb[0].mxu0 %v944
    %v1040 = vpop.f32.mrb[0].mxu0
    %v1041 = vadd.f32 %v920, %v1040
    %v1042 = vpop.f32.mrb[0].mxu0
    %v1043 = vpop.f32.mrb[0].mxu0
    %v1044 = vadd.f32 %v920, %v1043
    %v1045 = vpop.f32.mrb[0].mxu0
    %1046 = vmatprep.mubr.bf16.mxu0 0
    %1047 = vmatmul.mubr.bf16.gmra.mrb[0].mxu0 %v947
    %v1048 = vpop.f32.mrb[0].mxu0
    %v1049 = vadd.f32 %v920, %v1048
    %v1050 = vpop.f32.mrb[0].mxu0
    %v1051 = vpop.f32.mrb[0].mxu0
    %v1052 = vadd.f32 %v920, %v1051
    %v1053 = vpop.f32.mrb[0].mxu0
    %1054 = vmatprep.mubr.bf16.mxu0 0
    %1055 = vmatmul.mubr.bf16.gmra.mrb[0].mxu0 %v950
    %v1056 = vpop.f32.mrb[0].mxu0
    %v1057 = vadd.f32 %v920, %v1056
    %v1058 = vpop.f32.mrb[0].mxu0
    %v1059 = vpop.f32.mrb[0].mxu0
    %v1060 = vadd.f32 %v920, %v1059
    %v1061 = vpop.f32.mrb[0].mxu0
    %1062 = vmatprep.mubr.bf16.mxu0 0
    %1063 = vmatmul.mubr.bf16.gmra.mrb[0].mxu0 %v953
    %v1064 = vpop.f32.mrb[0].mxu0
    %v1065 = vadd.f32 %v920, %v1064
    %v1066 = vpop.f32.mrb[0].mxu0
    %v1067 = vpop.f32.mrb[0].mxu0
    %v1068 = vadd.f32 %v920, %v1067
    %v1069 = vpop.f32.mrb[0].mxu0
    %1070 = vmatprep.mubr.bf16.mxu0 0
    %1071 = vmatmul.mubr.bf16.gmra.mrb[0].mxu0 %v956
    %v1072 = vpop.f32.mrb[0].mxu0
    %v1073 = vadd.f32 %v920, %v1072
    %v1074 = vpop.f32.mrb[0].mxu0
    %v1075 = vpop.f32.mrb[0].mxu0
    %v1076 = vadd.f32 %v920, %v1075
    %v1077 = vpop.f32.mrb[0].mxu0
    %1078 = vmatprep.mubr.bf16.mxu0 0
    %1079 = vmatmul.mubr.bf16.gmra.mrb[0].mxu0 %v959
    %v1080 = vpop.f32.mrb[0].mxu0
    %v1081 = vadd.f32 %v920, %v1080
    %v1082 = vpop.f32.mrb[0].mxu0
    %v1083 = vpop.f32.mrb[0].mxu0
    %v1084 = vadd.f32 %v920, %v1083
    %v1085 = vpop.f32.mrb[0].mxu0
    %1086 = vmatprep.mubr.bf16.mxu0 0
    %1087 = vmatmul.mubr.bf16.gmra.mrb[0].mxu0 %v962
    %v1088 = vpop.f32.mrb[0].mxu0
    %v1089 = vadd.f32 %v920, %v1088
    %v1090 = vpop.f32.mrb[0].mxu0
    %v1091 = vpop.f32.mrb[0].mxu0
    %v1092 = vadd.f32 %v920, %v1091
    %v1093 = vpop.f32.mrb[0].mxu0
    %1094 = vmatprep.mubr.bf16.mxu0 0
    %1095 = vmatmul.mubr.bf16.gmra.mrb[0].mxu0 %v965
    %v1096 = vpop.f32.mrb[0].mxu0
    %v1097 = vadd.f32 %v920, %v1096
    %v1098 = vpop.f32.mrb[0].mxu0
    %v1099 = vpop.f32.mrb[0].mxu0
    %v1100 = vadd.f32 %v920, %v1099
    %v1101 = vpop.f32.mrb[0].mxu0
    %1102 = vmatprep.mubr.bf16.mxu0 0
    %1103 = vmatmul.mubr.bf16.gmra.mrb[0].mxu0 %v968
    %v1104 = vpop.f32.mrb[0].mxu0
    %v1105 = vadd.f32 %v920, %v1104
    %v1106 = vpop.f32.mrb[0].mxu0
    %v1107 = vpop.f32.mrb[0].mxu0
    %v1108 = vadd.f32 %v920, %v1107
    %v1109 = vpop.f32.mrb[0].mxu0
    %1110 = vmatprep.mubr.bf16.mxu0 0
    %1111 = vmatmul.mubr.bf16.gmra.mrb[0].mxu0 %v971
    %v1112 = vpop.f32.mrb[0].mxu0
    %v1113 = vadd.f32 %v920, %v1112
    %v1114 = vpop.f32.mrb[0].mxu0
    %v1115 = vpop.f32.mrb[0].mxu0
    %v1116 = vadd.f32 %v920, %v1115
    %v1117 = vpop.f32.mrb[0].mxu0
    %1118 = vmatprep.mubr.bf16.mxu0 0
    %1119 = vmatmul.mubr.bf16.gmra.mrb[0].mxu0 %v974
    %v1120 = vpop.f32.mrb[0].mxu0
    %v1121 = vadd.f32 %v920, %v1120
    %v1122 = vpop.f32.mrb[0].mxu0
    %v1123 = vpop.f32.mrb[0].mxu0
    %v1124 = vadd.f32 %v920, %v1123
    %v1125 = vpop.f32.mrb[0].mxu0
    %1126 = vmatprep.mubr.bf16.mxu0 0
    %1127 = vmatmul.mubr.bf16.gmra.mrb[0].mxu0 %v977
    %v1128 = vpop.f32.mrb[0].mxu0
    %v1129 = vadd.f32 %v920, %v1128
    %v1130 = vpop.f32.mrb[0].mxu0
    %v1131 = vpop.f32.mrb[0].mxu0
    %v1132 = vadd.f32 %v920, %v1131
    %v1133 = vpop.f32.mrb[0].mxu0
    %1134 = vmatprep.mubr.bf16.mxu0 0
    %1135 = vmatmul.mubr.bf16.gmra.mrb[0].mxu0 %v980
    %v1136 = vpop.f32.mrb[0].mxu0
    %v1137 = vadd.f32 %v920, %v1136
    %v1138 = vpop.f32.mrb[0].mxu0
    %v1139 = vpop.f32.mrb[0].mxu0
    %v1140 = vadd.f32 %v920, %v1139
    %v1141 = vpop.f32.mrb[0].mxu0
    %1142 = vdwg.mxu0
    %v1143 = vmax.f32 %v1017, 0.0
    %v1144 = vmax.f32 %v1020, 0.0
    %v1145 = vmax.f32 %v1025, 0.0
    %v1146 = vmax.f32 %v1028, 0.0
    %v1147 = vmax.f32 %v1033, 0.0
    %v1148 = vmax.f32 %v1036, 0.0
    %v1149 = vmax.f32 %v1041, 0.0
    %v1150 = vmax.f32 %v1044, 0.0
    %v1151 = vmax.f32 %v1049, 0.0
    %v1152 = vmax.f32 %v1052, 0.0
    %v1153 = vmax.f32 %v1057, 0.0
    %v1154 = vmax.f32 %v1060, 0.0
    %v1155 = vmax.f32 %v1065, 0.0
    %v1156 = vmax.f32 %v1068, 0.0
    %v1157 = vmax.f32 %v1073, 0.0
    %v1158 = vmax.f32 %v1076, 0.0
    %v1159 = vmax.f32 %v1081, 0.0
    %v1160 = vmax.f32 %v1084, 0.0
    %v1161 = vmax.f32 %v1089, 0.0
    %v1162 = vmax.f32 %v1092, 0.0
    %v1163 = vmax.f32 %v1097, 0.0
    %v1164 = vmax.f32 %v1100, 0.0
    %v1165 = vmax.f32 %v1105, 0.0
    %v1166 = vmax.f32 %v1108, 0.0
    %v1167 = vmax.f32 %v1113, 0.0
    %v1168 = vmax.f32 %v1116, 0.0
    %v1169 = vmax.f32 %v1121, 0.0
    %v1170 = vmax.f32 %v1124, 0.0
    %v1171 = vmax.f32 %v1129, 0.0
    %v1172 = vmax.f32 %v1132, 0.0
    %v1173 = vmax.f32 %v1137, 0.0
    %v1174 = vmax.f32 %v1140, 0.0
    %v1175 = vld [vmem:[%s5] sm:$0x1]
    %v1177 = vsel %vm369, %v1175, 0
    %v1180 = vsel %vm369, %v1143, 0
    %v1183 = vsel %vm369, %v1144, 0
    %v1186 = vsel %vm369, %v1145, 0
    %v1189 = vsel %vm369, %v1146, 0
    %v1192 = vsel %vm369, %v1147, 0
    %v1195 = vsel %vm369, %v1148, 0
    %v1198 = vsel %vm369, %v1149, 0
    %v1201 = vsel %vm369, %v1150, 0
    %v1204 = vsel %vm369, %v1151, 0
    %v1207 = vsel %vm369, %v1152, 0
    %v1210 = vsel %vm369, %v1153, 0
    %v1213 = vsel %vm369, %v1154, 0
    %v1216 = vsel %vm369, %v1155, 0
    %v1219 = vsel %vm369, %v1156, 0
    %v1222 = vsel %vm369, %v1157, 0
    %v1225 = vsel %vm369, %v1158, 0
    %v1228 = vsel %vm369, %v1159, 0
    %v1231 = vsel %vm369, %v1160, 0
    %v1234 = vsel %vm369, %v1161, 0
    %v1237 = vsel %vm369, %v1162, 0
    %v1240 = vsel %vm369, %v1163, 0
    %v1243 = vsel %vm369, %v1164, 0
    %v1246 = vsel %vm369, %v1165, 0
    %v1249 = vsel %vm369, %v1166, 0
    %v1252 = vsel %vm369, %v1167, 0
    %v1255 = vsel %vm369, %v1168, 0
    %v1258 = vsel %vm369, %v1169, 0
    %v1261 = vsel %vm369, %v1170, 0
    %v1264 = vsel %vm369, %v1171, 0
    %v1267 = vsel %vm369, %v1172, 0
    %v1270 = vsel %vm369, %v1173, 0
    %v1273 = vsel %vm369, %v1174, 0
    %1275 = vmatprep.subr.mxu0 0.0
    %1276 = vmatpush1.xpose.msra.mxu0 %v1180
    %1277 = vmatprep.subr.mxu0 0.0
    %1278 = vmatpush1.xpose.msra.mxu0 %v1183
    %1279 = vmatprep.subr.mxu0 0.0
    %1280 = vmatpush1.xpose.msra.mxu0 %v1186
    %1281 = vmatprep.subr.mxu0 0.0
    %1282 = vmatpush1.xpose.msra.mxu0 %v1189
    %1283 = vmatprep.subr.mxu0 0.0
    %1284 = vmatpush1.xpose.msra.mxu0 %v1192
    %1285 = vmatprep.subr.mxu0 0.0
    %1286 = vmatpush1.xpose.msra.mxu0 %v1195
    %1287 = vmatprep.subr.mxu0 0.0
    %1288 = vmatpush1.xpose.msra.mxu0 %v1198
    %1289 = vmatprep.subr.mxu0 0.0
    %1290 = vmatpush1.xpose.msra.mxu0 %v1201
    %1291 = vmatprep.subr.mxu0 0.0
    %1292 = vmatpush1.xpose.msra.mxu0 %v1204
    %1293 = vmatprep.subr.mxu0 0.0
    %1294 = vmatpush1.xpose.msra.mxu0 %v1207
    %1295 = vmatprep.subr.mxu0 0.0
    %1296 = vmatpush1.xpose.msra.mxu0 %v1210
    %1297 = vmatprep.subr.mxu0 0.0
    %1298 = vmatpush1.xpose.msra.mxu0 %v1213
    %1299 = vmatprep.subr.mxu0 0.0
    %1300 = vmatpush1.xpose.msra.mxu0 %v1216
    %1301 = vmatprep.subr.mxu0 0.0
    %1302 = vmatpush1.xpose.msra.mxu0 %v1219
    %1303 = vmatprep.subr.mxu0 0.0
    %1304 = vmatpush1.xpose.msra.mxu0 %v1222
    %1305 = vmatprep.subr.mxu0 0.0
    %1306 = vmatpush1.xpose.msra.mxu0 %v1225
    %1307 = vmatprep.subr.mxu0 0.0
    %1308 = vmatpush1.xpose.msra.mxu0 %v1228
    %1309 = vmatprep.subr.mxu0 0.0
    %1310 = vmatpush1.xpose.msra.mxu0 %v1231
    %1311 = vmatprep.subr.mxu0 0.0
    %1312 = vmatpush1.xpose.msra.mxu0 %v1234
    %1313 = vmatprep.subr.mxu0 0.0
    %1314 = vmatpush1.xpose.msra.mxu0 %v1237
    %1315 = vmatprep.subr.mxu0 0.0
    %1316 = vmatpush1.xpose.msra.mxu0 %v1240
    %1317 = vmatprep.subr.mxu0 0.0
    %1318 = vmatpush1.xpose.msra.mxu0 %v1243
    %1319 = vmatprep.subr.mxu0 0.0
    %1320 = vmatpush1.xpose.msra.mxu0 %v1246
    %1321 = vmatprep.subr.mxu0 0.0
    %1322 = vmatpush1.xpose.msra.mxu0 %v1249
    %1323 = vmatprep.subr.mxu0 0.0
    %1324 = vmatpush1.xpose.msra.mxu0 %v1252
    %1325 = vmatprep.subr.mxu0 0.0
    %1326 = vmatpush1.xpose.msra.mxu0 %v1255
    %1327 = vmatprep.subr.mxu0 0.0
    %1328 = vmatpush1.xpose.msra.mxu0 %v1258
    %1329 = vmatprep.subr.mxu0 0.0
    %1330 = vmatpush1.xpose.msra.mxu0 %v1261
    %1331 = vmatprep.subr.mxu0 0.0
    %1332 = vmatpush1.xpose.msra.mxu0 %v1264
    %1333 = vmatprep.subr.mxu0 0.0
    %1334 = vmatpush1.xpose.msra.mxu0 %v1267
    %1335 = vmatprep.subr.mxu0 0.0
    %1336 = vmatpush1.xpose.msra.mxu0 %v1270
    %1337 = vmatprep.subr.mxu0 0.0
    %1338 = vmatpush1.xpose.msra.mxu0 %v1273
    %1339 = vmatprep.mubr.f32.mxu0 0.0
    %1340 = vmatmul.mubr.f32.gmra.mrb[0].mxu0 %v1177
    %v1341 = vpop.f32.mrb[0].mxu0
    %v1342 = vadd.f32 0.0, %v1341
    %v1343 = vpop.f32.mrb[0].mxu0
    %v1344 = vadd.f32 0.0, %v1343
    %1345 = vdwg.mxu0
    %v1348 = vcombine.low %v1342, %v1344
    %v1350 = vunpack.c.l.s4 1966171168
    %v1351 = vunpack.c.0.s8 %v1350
    %v1352 = vlaneseq
    %v1353 = vshrl.u32 %v1352, 7
    %v1354 = vsub.s32 %v1351, %v1353
    %v1355 = vrot.slane %v1348, %v1354
    %v1357 = vunpack.c.l.s4 1966171168
    %v1358 = vunpack.c.0.s8 %v1357
    %v1359 = vlaneseq
    %v1360 = vshrl.u32 %v1359, 7
    %v1361 = vsub.s32 %v1358, %v1360
    %v1362 = vrot.slane %v1355, %v1361
    %v1364 = vlaneseq
    %vm1365 = vcmp.ge.s32.totalorder %v1364, 0
    %vm1366 = vcmp.lt.s32.totalorder %v1364, 256
    %vm1367 = vmand %vm1365, %vm1366
    %1368 = vst.msk [vmem:[#allocation2] sm:$0x3] %vm1367, %v1362
    // Predicated region
    $region26: #{_deep_nn_forward.1} parent=1 // pred_check
      _
    $region27: #{_deep_nn_forward.1} parent=1 // pred_check_branch
      %1370 = sbr.rel (0) target = $region29
    $region28: #{_deep_nn_forward.1} parent=1 // pred_region
      %s1372 = ssub.s32 32, 32
      %1373 = vsyncadd [#allocation3], %s1372
      %s1375 = sshll.u32 [#allocation2], 4
      %s1376 = int_to_ptr.vmem [resolvable:$true] %s1375
      %1378 = dma.vmem_to_hbm [thread:$0]  %s1376, 32, %s6, [#allocation3]
    $region29: #{_deep_nn_forward.1} parent=1 // pred_fallthru
      _
    // Predicated region
    $region30: #{_deep_nn_forward.1} parent=1 // pred_check
      _
    $region31: #{_deep_nn_forward.1} parent=1 // pred_check_branch
      %1380 = sbr.rel (0) target = $region33
    $region32: #{_deep_nn_forward.1} parent=1 // pred_region
      %1381 = dma.done [#allocation3], 32
    $region33: #{_deep_nn_forward.1} parent=1 // pred_fallthru
      _
    %1382 = vsyncpa [#allocation3], 1

</llo_original>
